<compile_context>
chip_gen: v7x
topology: tpu7x:2x2x1
jax: 0.10.0
libtpu: 0.0.40
codegen_flags: <defaults>
</compile_context>

<pallas_src>
import functools

import jax
import jax.numpy as jnp
from jax.experimental import pallas as pl
from jax.experimental.pallas import tpu as pltpu


def _round_up(n, m):
    return ((n + m - 1) // m) * m


def nn2_kernel(alphas_ref,                      # scalar-prefetch (SMEM): [a1, a2]
               x_ref, bn_s_ref, bn_b_ref,
               w1_ref, b1_ref,
               w2_ref, b2_ref,
               w3_ref, b3_ref,
               o_ref):
    mm_dtype = w1_ref.dtype

    x = x_ref[...].astype(jnp.float32)
    # BatchNorm1d (eval, folded) -> Dropout1 (identity) -> ReLU      (VPU, f32)
    h = jnp.maximum(x * bn_s_ref[...] + bn_b_ref[...], 0.0)

    # linear1 (MXU, bf16 operands / f32 accumulate)
    h = jnp.dot(h.astype(mm_dtype), w1_ref[...],
                preferred_element_type=jnp.float32) + b1_ref[...]
    # batchnorm2 result unused in reference forward; dropout2 = identity; PReLU
    a1 = alphas_ref[0]
    h = jnp.where(h >= 0.0, h, a1 * h)

    # linear2 (weight_norm folded into effective weight outside the kernel)
    h = jnp.dot(h.astype(mm_dtype), w2_ref[...],
                preferred_element_type=jnp.float32) + b2_ref[...]
    # dropout3 = identity; PReLU 2
    a2 = alphas_ref[1]
    h = jnp.where(h >= 0.0, h, a2 * h)

    # linear3 (weight_norm)
    h = jnp.dot(h.astype(mm_dtype), w3_ref[...],
                preferred_element_type=jnp.float32) + b3_ref[...]

    o_ref[...] = h.astype(o_ref.dtype)


def prepare_params(params, matmul_dtype=jnp.bfloat16):
    """One-time parameter prep (hoisted out of the per-call forward)."""
    return {
        "bn_scale": params["bn_scale"].astype(jnp.float32),
        "bn_shift": params["bn_shift"].astype(jnp.float32),
        "w1": params["w1"].astype(matmul_dtype),
        "b1": params["b1"].astype(jnp.float32),
        "w2": params["w2"].astype(matmul_dtype),
        "b2": params["b2"].astype(jnp.float32),
        "w3": params["w3"].astype(matmul_dtype),
        "b3": params["b3"].astype(jnp.float32),
        "alphas": jnp.stack([params["a1"].reshape(()),
                             params["a2"].reshape(())]).astype(jnp.float32),
    }


@functools.partial(jax.jit, static_argnames=("block_m",))
def nn2_forward(x, prepped, *, block_m=None):
    N, F = x.shape
    H0 = prepped["w1"].shape[1]
    H1 = prepped["w2"].shape[1]
    T = prepped["w3"].shape[1]

    if block_m is None:
        if N <= 128:
            block_m = N                                   # one step; tiny batch
        else:
            # >= 2 grid steps so both v7x TensorCores get work; cap tile at 1024.
            block_m = min(1024, _round_up(-(-N // 2), 8))
    grid = (pl.cdiv(N, block_m),)

    # Grid-invariant blocks (weights / biases / folded BN).
    full = lambda shape: pl.BlockSpec(shape, lambda i, a, _s=shape: (0,) * len(_s))

    out = pl.pallas_call(
        nn2_kernel,
        out_shape=jax.ShapeDtypeStruct((N, T), x.dtype),
        grid_spec=pltpu.PrefetchScalarGridSpec(
            num_scalar_prefetch=1,          # alphas -> SMEM scalar path
            grid=grid,
            in_specs=[
                pl.BlockSpec((block_m, F), lambda i, a: (i, 0)),   # x tile (unpadded)
                full((1, F)), full((1, F)),                        # bn scale / shift
                full((F, H0)), full((1, H0)),                      # W1, b1
                full((H0, H1)), full((1, H1)),                     # W2, b2
                full((H1, T)), full((1, T)),                       # W3, b3
            ],
            out_specs=pl.BlockSpec((block_m, T), lambda i, a: (i, 0)),
        ),
        compiler_params=pltpu.CompilerParams(
            dimension_semantics=("parallel",)),
    )(prepped["alphas"], x, prepped["bn_scale"], prepped["bn_shift"],
      prepped["w1"], prepped["b1"], prepped["w2"], prepped["b2"],
      prepped["w3"], prepped["b3"])

    return out


def weight_norm_effective(v, g):
    # PyTorch nn.utils.weight_norm on Linear (dim=0): W = g * v / ||v||_row
    norm = jnp.sqrt(jnp.sum(v * v, axis=1, keepdims=True))
    return v * (g[:, None] / norm)


def make_params(key, num_features, hidden_sizes, num_targets):
    H0, H1 = hidden_sizes
    ks = jax.random.split(key, 16)
    eps = 1e-5

    # BatchNorm1d(num_features): gamma, beta, running_mean, running_var (eval fold)
    gamma = 1.0 + 0.1 * jax.random.normal(ks[0], (num_features,), jnp.float32)
    beta = 0.1 * jax.random.normal(ks[1], (num_features,), jnp.float32)
    rmean = 0.1 * jax.random.normal(ks[2], (num_features,), jnp.float32)
    rvar = jnp.abs(jax.random.normal(ks[3], (num_features,), jnp.float32)) + 0.5
    bn_scale = gamma / jnp.sqrt(rvar + eps)
    bn_shift = beta - rmean * bn_scale

    # linear1
    w1 = 0.1 * jax.random.normal(ks[4], (H0, num_features), jnp.float32)
    b1 = 0.1 * jax.random.normal(ks[5], (H0,), jnp.float32)

    # PReLU shared alphas (PyTorch default init = 0.25)
    a1 = jnp.array(0.25, jnp.float32)
    a2 = jnp.array(0.25, jnp.float32)

    # linear2: weight_norm(Linear(H0, H1))
    v2 = 0.1 * jax.random.normal(ks[6], (H1, H0), jnp.float32)
    g2 = jnp.abs(jax.random.normal(ks[7], (H1,), jnp.float32)) + 0.5
    w2 = weight_norm_effective(v2, g2)
    b2 = 0.1 * jax.random.normal(ks[8], (H1,), jnp.float32)

    # linear3: weight_norm(Linear(H1, num_targets))
    v3 = 0.1 * jax.random.normal(ks[9], (num_targets, H1), jnp.float32)
    g3 = jnp.abs(jax.random.normal(ks[10], (num_targets,), jnp.float32)) + 0.5
    w3 = weight_norm_effective(v3, g3)
    b3 = 0.1 * jax.random.normal(ks[11], (num_targets,), jnp.float32)

    return {
        "bn_scale": bn_scale.reshape(1, num_features),
        "bn_shift": bn_shift.reshape(1, num_features),
        "w1": w1.T, "b1": b1.reshape(1, H0), "a1": a1,
        "w2": w2.T, "b2": b2.reshape(1, H1), "a2": a2,
        "w3": w3.T, "b3": b3.reshape(1, num_targets),
    }


def nn2_reference(x, p, matmul_dtype=jnp.float32):
    """Pure-JAX reference. matmul_dtype mirrors the kernel's MXU operand cast."""
    h = jnp.maximum(x * p["bn_scale"] + p["bn_shift"], 0.0)
    h = jnp.dot(h.astype(matmul_dtype), p["w1"].astype(matmul_dtype),
                preferred_element_type=jnp.float32) + p["b1"]
    h = jnp.where(h >= 0.0, h, p["a1"] * h)
    h = jnp.dot(h.astype(matmul_dtype), p["w2"].astype(matmul_dtype),
                preferred_element_type=jnp.float32) + p["b2"]
    h = jnp.where(h >= 0.0, h, p["a2"] * h)
    return jnp.dot(h.astype(matmul_dtype), p["w3"].astype(matmul_dtype),
                   preferred_element_type=jnp.float32) + p["b3"]


if __name__ == "__main__":
    num_features, hidden_sizes, num_targets = 32, (64, 32), 8
    batch = 16

    key = jax.random.PRNGKey(0)
    kx, kp = jax.random.split(key)
    x = jax.random.normal(kx, (batch, num_features), jnp.float32)
    params = make_params(kp, num_features, hidden_sizes, num_targets)

    # One-time parameter preparation (outside the jitted per-call forward).
    prepped = jax.block_until_ready(prepare_params(params))

    out = nn2_forward(x, prepped)                 # bf16 MXU operands, f32 accum
    out = jax.block_until_ready(out)
    assert out.shape == (batch, num_targets)

    # Check against a reference using the same bf16 operand casts (tight) ...
    ref_bf16 = nn2_reference(x, params, matmul_dtype=jnp.bfloat16)
    assert jnp.allclose(out, ref_bf16, atol=1e-3, rtol=1e-3), "mismatch vs bf16 reference"
    # ... and against the full-f32 module semantics (loose, bf16 rounding only).
    ref_f32 = nn2_reference(x, params, matmul_dtype=jnp.float32)
    assert jnp.allclose(out, ref_f32, atol=5e-2, rtol=5e-2), "mismatch vs f32 reference"

    print("KERNEL_OK")
</pallas_src>

<mosaic_0001>
module attributes {stable_mosaic.version = 11 : i64} {
  func.func @nn2_kernel(%arg0: i32, %arg1: memref<2xf32, #tpu.memory_space<smem>>, %arg2: memref<16x32xf32, #tpu.memory_space<vmem>>, %arg3: memref<1x32xf32, #tpu.memory_space<vmem>>, %arg4: memref<1x32xf32, #tpu.memory_space<vmem>>, %arg5: memref<32x64xbf16, #tpu.memory_space<vmem>>, %arg6: memref<1x64xf32, #tpu.memory_space<vmem>>, %arg7: memref<64x32xbf16, #tpu.memory_space<vmem>>, %arg8: memref<1x32xf32, #tpu.memory_space<vmem>>, %arg9: memref<32x8xbf16, #tpu.memory_space<vmem>>, %arg10: memref<1x8xf32, #tpu.memory_space<vmem>>, %arg11: memref<16x8xf32, #tpu.memory_space<vmem>>) attributes {dimension_semantics = [#tpu.dimension_semantics<parallel>], iteration_bounds = array<i64: 1>, scalar_prefetch = 1 : i64, scratch_operands = 0 : i64, tpu.core_type = #tpu.core_type<tc>, window_params = [{transform_indices = @transform_0, window_bounds = array<i64: 16, 32>}, {pipeline_mode = #tpu.pipeline_mode<synchronous>, transform_indices = @transform_1, window_bounds = array<i64: 1, 32>}, {pipeline_mode = #tpu.pipeline_mode<synchronous>, transform_indices = @transform_2, window_bounds = array<i64: 1, 32>}, {pipeline_mode = #tpu.pipeline_mode<synchronous>, transform_indices = @transform_3, window_bounds = array<i64: 32, 64>}, {pipeline_mode = #tpu.pipeline_mode<synchronous>, transform_indices = @transform_4, window_bounds = array<i64: 1, 64>}, {pipeline_mode = #tpu.pipeline_mode<synchronous>, transform_indices = @transform_5, window_bounds = array<i64: 64, 32>}, {pipeline_mode = #tpu.pipeline_mode<synchronous>, transform_indices = @transform_6, window_bounds = array<i64: 1, 32>}, {pipeline_mode = #tpu.pipeline_mode<synchronous>, transform_indices = @transform_7, window_bounds = array<i64: 32, 8>}, {pipeline_mode = #tpu.pipeline_mode<synchronous>, transform_indices = @transform_8, window_bounds = array<i64: 1, 8>}, {transform_indices = @transform_9, window_bounds = array<i64: 16, 8>}]} {
    %c0 = arith.constant 0 : index
    %c0_0 = arith.constant 0 : index
    %0 = vector.load %arg2[%c0, %c0_0] : memref<16x32xf32, #tpu.memory_space<vmem>>, vector<16x32xf32>
    %c0_1 = arith.constant 0 : index
    %c0_2 = arith.constant 0 : index
    %1 = vector.load %arg3[%c0_1, %c0_2] : memref<1x32xf32, #tpu.memory_space<vmem>>, vector<1x32xf32>
    %2 = vector.broadcast %1 : vector<1x32xf32> to vector<16x32xf32>
    %3 = arith.mulf %0, %2 : vector<16x32xf32>
    %c0_3 = arith.constant 0 : index
    %c0_4 = arith.constant 0 : index
    %4 = vector.load %arg4[%c0_3, %c0_4] : memref<1x32xf32, #tpu.memory_space<vmem>>, vector<1x32xf32>
    %5 = vector.broadcast %4 : vector<1x32xf32> to vector<16x32xf32>
    %6 = arith.addf %3, %5 : vector<16x32xf32>
    %cst = arith.constant 0.000000e+00 : f32
    %7 = vector.broadcast %cst : f32 to vector<16x32xf32>
    %8 = arith.maximumf %6, %7 : vector<16x32xf32>
    %9 = arith.truncf %8 : vector<16x32xf32> to vector<16x32xbf16>
    %c0_5 = arith.constant 0 : index
    %c0_6 = arith.constant 0 : index
    %10 = vector.load %arg5[%c0_5, %c0_6] : memref<32x64xbf16, #tpu.memory_space<vmem>>, vector<32x64xbf16>
    %cst_7 = arith.constant dense<0.000000e+00> : vector<16x64xf32>
    %11 = tpu.matmul %9, %10, %cst_7 {dimension_numbers = #tpu.dot_dimension_numbers<[1], [0], [0], [1], [0, 0, 1, 1], [], []>} : vector<16x32xbf16>, vector<32x64xbf16>, vector<16x64xf32> -> vector<16x64xf32>
    %c0_8 = arith.constant 0 : index
    %c0_9 = arith.constant 0 : index
    %12 = vector.load %arg6[%c0_8, %c0_9] : memref<1x64xf32, #tpu.memory_space<vmem>>, vector<1x64xf32>
    %13 = vector.broadcast %12 : vector<1x64xf32> to vector<16x64xf32>
    %14 = arith.addf %11, %13 : vector<16x64xf32>
    %c0_10 = arith.constant 0 : index
    %15 = memref.load %arg1[%c0_10] : memref<2xf32, #tpu.memory_space<smem>>
    %cst_11 = arith.constant 0.000000e+00 : f32
    %16 = vector.broadcast %cst_11 : f32 to vector<16x64xf32>
    %17 = arith.cmpf oge, %14, %16 : vector<16x64xf32>
    %18 = vector.broadcast %15 : f32 to vector<16x64xf32>
    %19 = arith.mulf %18, %14 : vector<16x64xf32>
    %20 = arith.select %17, %14, %19 : vector<16x64xi1>, vector<16x64xf32>
    %21 = arith.truncf %20 : vector<16x64xf32> to vector<16x64xbf16>
    %c0_12 = arith.constant 0 : index
    %c0_13 = arith.constant 0 : index
    %22 = vector.load %arg7[%c0_12, %c0_13] : memref<64x32xbf16, #tpu.memory_space<vmem>>, vector<64x32xbf16>
    %cst_14 = arith.constant dense<0.000000e+00> : vector<16x32xf32>
    %23 = tpu.matmul %21, %22, %cst_14 {dimension_numbers = #tpu.dot_dimension_numbers<[1], [0], [0], [1], [0, 0, 1, 1], [], []>} : vector<16x64xbf16>, vector<64x32xbf16>, vector<16x32xf32> -> vector<16x32xf32>
    %c0_15 = arith.constant 0 : index
    %c0_16 = arith.constant 0 : index
    %24 = vector.load %arg8[%c0_15, %c0_16] : memref<1x32xf32, #tpu.memory_space<vmem>>, vector<1x32xf32>
    %25 = vector.broadcast %24 : vector<1x32xf32> to vector<16x32xf32>
    %26 = arith.addf %23, %25 : vector<16x32xf32>
    %c1 = arith.constant 1 : index
    %27 = memref.load %arg1[%c1] : memref<2xf32, #tpu.memory_space<smem>>
    %cst_17 = arith.constant 0.000000e+00 : f32
    %28 = vector.broadcast %cst_17 : f32 to vector<16x32xf32>
    %29 = arith.cmpf oge, %26, %28 : vector<16x32xf32>
    %30 = vector.broadcast %27 : f32 to vector<16x32xf32>
    %31 = arith.mulf %30, %26 : vector<16x32xf32>
    %32 = arith.select %29, %26, %31 : vector<16x32xi1>, vector<16x32xf32>
    %33 = arith.truncf %32 : vector<16x32xf32> to vector<16x32xbf16>
    %c0_18 = arith.constant 0 : index
    %c0_19 = arith.constant 0 : index
    %34 = vector.load %arg9[%c0_18, %c0_19] : memref<32x8xbf16, #tpu.memory_space<vmem>>, vector<32x8xbf16>
    %cst_20 = arith.constant dense<0.000000e+00> : vector<16x8xf32>
    %35 = tpu.matmul %33, %34, %cst_20 {dimension_numbers = #tpu.dot_dimension_numbers<[1], [0], [0], [1], [0, 0, 1, 1], [], []>} : vector<16x32xbf16>, vector<32x8xbf16>, vector<16x8xf32> -> vector<16x8xf32>
    %c0_21 = arith.constant 0 : index
    %c0_22 = arith.constant 0 : index
    %36 = vector.load %arg10[%c0_21, %c0_22] : memref<1x8xf32, #tpu.memory_space<vmem>>, vector<1x8xf32>
    %37 = vector.broadcast %36 : vector<1x8xf32> to vector<16x8xf32>
    %38 = arith.addf %35, %37 : vector<16x8xf32>
    %c0_23 = arith.constant 0 : index
    %c0_24 = arith.constant 0 : index
    %39 = vector.load %arg11[%c0_23, %c0_24] : memref<16x8xf32, #tpu.memory_space<vmem>>, vector<16x8xf32>
    tpu.vector_store %arg11[%c0_23, %c0_24], %38 {strides = array<i32>} : memref<16x8xf32, #tpu.memory_space<vmem>>, vector<16x8xf32>,
    return
  }
  func.func @transform_0(%arg0: i32, %arg1: memref<2xf32, #tpu.memory_space<smem>>) -> (i32, i32) {
    %c0_i32 = arith.constant 0 : i32
    %c0_i32_0 = arith.constant 0 : i32
    return %arg0, %c0_i32 : i32, i32
  }
  func.func @transform_1(%arg0: i32, %arg1: memref<2xf32, #tpu.memory_space<smem>>) -> (i32, i32) {
    %c0_i32 = arith.constant 0 : i32
    %c0_i32_0 = arith.constant 0 : i32
    %c0_i32_1 = arith.constant 0 : i32
    return %c0_i32, %c0_i32_0 : i32, i32
  }
  func.func @transform_2(%arg0: i32, %arg1: memref<2xf32, #tpu.memory_space<smem>>) -> (i32, i32) {
    %c0_i32 = arith.constant 0 : i32
    %c0_i32_0 = arith.constant 0 : i32
    %c0_i32_1 = arith.constant 0 : i32
    return %c0_i32, %c0_i32_0 : i32, i32
  }
  func.func @transform_3(%arg0: i32, %arg1: memref<2xf32, #tpu.memory_space<smem>>) -> (i32, i32) {
    %c0_i32 = arith.constant 0 : i32
    %c0_i32_0 = arith.constant 0 : i32
    %c0_i32_1 = arith.constant 0 : i32
    return %c0_i32, %c0_i32_0 : i32, i32
  }
  func.func @transform_4(%arg0: i32, %arg1: memref<2xf32, #tpu.memory_space<smem>>) -> (i32, i32) {
    %c0_i32 = arith.constant 0 : i32
    %c0_i32_0 = arith.constant 0 : i32
    %c0_i32_1 = arith.constant 0 : i32
    return %c0_i32, %c0_i32_0 : i32, i32
  }
  func.func @transform_5(%arg0: i32, %arg1: memref<2xf32, #tpu.memory_space<smem>>) -> (i32, i32) {
    %c0_i32 = arith.constant 0 : i32
    %c0_i32_0 = arith.constant 0 : i32
    %c0_i32_1 = arith.constant 0 : i32
    return %c0_i32, %c0_i32_0 : i32, i32
  }
  func.func @transform_6(%arg0: i32, %arg1: memref<2xf32, #tpu.memory_space<smem>>) -> (i32, i32) {
    %c0_i32 = arith.constant 0 : i32
    %c0_i32_0 = arith.constant 0 : i32
    %c0_i32_1 = arith.constant 0 : i32
    return %c0_i32, %c0_i32_0 : i32, i32
  }
  func.func @transform_7(%arg0: i32, %arg1: memref<2xf32, #tpu.memory_space<smem>>) -> (i32, i32) {
    %c0_i32 = arith.constant 0 : i32
    %c0_i32_0 = arith.constant 0 : i32
    %c0_i32_1 = arith.constant 0 : i32
    return %c0_i32, %c0_i32_0 : i32, i32
  }
  func.func @transform_8(%arg0: i32, %arg1: memref<2xf32, #tpu.memory_space<smem>>) -> (i32, i32) {
    %c0_i32 = arith.constant 0 : i32
    %c0_i32_0 = arith.constant 0 : i32
    %c0_i32_1 = arith.constant 0 : i32
    return %c0_i32, %c0_i32_0 : i32, i32
  }
  func.func @transform_9(%arg0: i32, %arg1: memref<2xf32, #tpu.memory_space<smem>>) -> (i32, i32) {
    %c0_i32 = arith.constant 0 : i32
    %c0_i32_0 = arith.constant 0 : i32
    return %arg0, %c0_i32 : i32, i32
  }
}

</mosaic_0001>

<llo_original>
// kernel: nn2_forward.1
$region0: #{nn2_forward.1}
  #allocation0 [shape = 'u32[]', space=smem, size = 0x4, offset = 0x4, fixed_abs, tag = 'smem constant byte address 0x4 - core index']
  #allocation1 [shape = 'u32[144,128]{1,0:T(1,128)}', space=vmem, size = 0x12000, scoped, tag = 'internal scratch']
  #allocation2 [shape = 's32[1]{0}', space=sflag, size = 0x4, scoped, tag = 'scoped memory for nn2_forward.1']
  #allocation3 [shape = 'u8[512]{0}', space=smem, size = 0x200, scoped, tag = 'prefetched SMEM operand 0']
  %s0 = inlined_call_operand.vmem [shape: f32[2], index: 0, kind: input, shape index: {}]
  %s1 = inlined_call_operand.vmem [shape: f32[16,32], index: 1, kind: input, shape index: {}]
  %s2 = inlined_call_operand.vmem [shape: f32[1,32], index: 2, kind: input, shape index: {}]
  %s3 = inlined_call_operand.vmem [shape: f32[1,32], index: 3, kind: input, shape index: {}]
  %s4 = inlined_call_operand.vmem [shape: bf16[32,64], index: 4, kind: input, shape index: {}]
  %s5 = inlined_call_operand.vmem [shape: f32[1,64], index: 5, kind: input, shape index: {}]
  %s6 = inlined_call_operand.vmem [shape: bf16[64,32], index: 6, kind: input, shape index: {}]
  %s7 = inlined_call_operand.vmem [shape: f32[1,32], index: 7, kind: input, shape index: {}]
  %s8 = inlined_call_operand.vmem [shape: bf16[32,8], index: 8, kind: input, shape index: {}]
  %s9 = inlined_call_operand.vmem [shape: f32[1,8], index: 9, kind: input, shape index: {}]
  %s10 = inlined_call_operand.vmem [shape: f32[16,8], index: 10, kind: output, shape index: {}]
  %s11 = sld [smem:[#allocation0]]
  $region46: #{nn2_forward.1} parent=0
    _
  %s13 = ssub.s32 1, %s11
  %s14 = scalar_select 0, %s13, %s11
  %s15 = sshll.u32 %s0, 4
  %s16 = int_to_ptr.vmem [resolvable:$true] %s15
  %18 = dma.vmem_to_smem %s16, 16, [#allocation3], [#allocation2]
  %19 = dma.done [#allocation2], 16
  %20 = sfence
  // Predicated region
  $region2: #{nn2_forward.1} parent=0 // pred_check
    _
  $region3: #{nn2_forward.1} parent=0 // pred_check_branch
    %22 = sbr.rel (0) target = $region5
  $region4: #{nn2_forward.1} parent=0 // pred_region
    _
  $region5: #{nn2_forward.1} parent=0 // pred_fallthru
    _
  // Predicated region
  $region6: #{nn2_forward.1} parent=0 // pred_check
    _
  $region7: #{nn2_forward.1} parent=0 // pred_check_branch
    %24 = sbr.rel (0) target = $region9
  $region8: #{nn2_forward.1} parent=0 // pred_region
    _
  $region9: #{nn2_forward.1} parent=0 // pred_fallthru
    _
  // Predicated region
  $region10: #{nn2_forward.1} parent=0 // pred_check
    _
  $region11: #{nn2_forward.1} parent=0 // pred_check_branch
    %26 = sbr.rel (0) target = $region13
  $region12: #{nn2_forward.1} parent=0 // pred_region
    _
  $region13: #{nn2_forward.1} parent=0 // pred_fallthru
    _
  // Predicated region
  $region14: #{nn2_forward.1} parent=0 // pred_check
    _
  $region15: #{nn2_forward.1} parent=0 // pred_check_branch
    %28 = sbr.rel (0) target = $region17
  $region16: #{nn2_forward.1} parent=0 // pred_region
    _
  $region17: #{nn2_forward.1} parent=0 // pred_fallthru
    _
  // Predicated region
  $region18: #{nn2_forward.1} parent=0 // pred_check
    _
  $region19: #{nn2_forward.1} parent=0 // pred_check_branch
    %30 = sbr.rel (0) target = $region21
  $region20: #{nn2_forward.1} parent=0 // pred_region
    _
  $region21: #{nn2_forward.1} parent=0 // pred_fallthru
    _
  // Predicated region
  $region22: #{nn2_forward.1} parent=0 // pred_check
    _
  $region23: #{nn2_forward.1} parent=0 // pred_check_branch
    %32 = sbr.rel (0) target = $region25
  $region24: #{nn2_forward.1} parent=0 // pred_region
    _
  $region25: #{nn2_forward.1} parent=0 // pred_fallthru
    _
  // Predicated region
  $region26: #{nn2_forward.1} parent=0 // pred_check
    _
  $region27: #{nn2_forward.1} parent=0 // pred_check_branch
    %34 = sbr.rel (0) target = $region29
  $region28: #{nn2_forward.1} parent=0 // pred_region
    _
  $region29: #{nn2_forward.1} parent=0 // pred_fallthru
    _
  // Predicated region
  $region30: #{nn2_forward.1} parent=0 // pred_check
    _
  $region31: #{nn2_forward.1} parent=0 // pred_check_branch
    %36 = sbr.rel (0) target = $region33
  $region32: #{nn2_forward.1} parent=0 // pred_region
    _
  $region33: #{nn2_forward.1} parent=0 // pred_fallthru
    _
  // Predicated region
  $region34: #{nn2_forward.1} parent=0 // pred_check
    _
  $region35: #{nn2_forward.1} parent=0 // pred_check_branch
    %38 = sbr.rel (0) target = $region37
  $region36: #{nn2_forward.1} parent=0 // pred_region
    _
  $region37: #{nn2_forward.1} parent=0 // pred_fallthru
    _
  %v40 = vld [vmem:[%s1] sm:$0xff]
  %v41 = vld [vmem:[%s1 + $0x8] sm:$0xff]
  %v42 = vld [vmem:[%s2] sm:$0x1]
  %v44 = vlaneseq
  %v45 = vshrl.u32 %v44, 7
  %v46 = vsub.s32 0, %v45
  %v47 = vrot.slane %v42, %v46
  %v49 = vmul.f32 %v40, %v47
  %v50 = vmul.f32 %v41, %v47
  %v51 = vld [vmem:[%s3] sm:$0x1]
  %v53 = vlaneseq
  %v54 = vshrl.u32 %v53, 7
  %v55 = vsub.s32 0, %v54
  %v56 = vrot.slane %v51, %v55
  %v58 = vadd.f32 %v49, %v56
  %v59 = vadd.f32 %v50, %v56
  %v60 = vmax.f32 %v58, 0.0
  %v61 = vmax.f32 %v59, 0.0
  %v62 = vpack.c.bf16 %v61, %v60
  %v63 = vld [vmem:[%s4] sm:$0xf]
  %v64 = vld [vmem:[%s4 + $0x4] sm:$0xf]
  %v65 = vld [vmem:[%s4 + $0x8] sm:$0xf]
  %v66 = vld [vmem:[%s4 + $0xc] sm:$0xf]
  %v67 = vld [vmem:[%s5] sm:$0x1]
  %v69 = vlaneseq
  %v70 = vshrl.u32 %v69, 7
  %v71 = vsub.s32 0, %v70
  %v72 = vrot.slane %v67, %v71
  %v78 = vunpack.c.l.b16 %v63
  %v79 = vunpack.c.l.b16 %v64
  %v80 = vunpack.c.l.b16 %v65
  %v81 = vunpack.c.l.b16 %v66
  %v82 = vpack.c.b16 %v79, %v78
  %v83 = vpack.c.b16 %v81, %v80
  %vm86 = vcmask 261120
  %v88 = vsel %vm86, %v62, 0
  %90 = vmatprep.subr.bf16.mxu0 0
  %91 = vmatpush1.bf16.msra.mxu0 %v82
  %92 = vmatprep.subr.bf16.mxu0 0
  %93 = vmatpush1.bf16.msra.mxu0 %v83
  %94 = vmatprep.subr.bf16.mxu0 0
  %95 = vmatpush1.bf16.msra.mxu0 0
  %96 = vmatprep.subr.bf16.mxu0 0
  %97 = vmatpush1.bf16.msra.mxu0 0
  %98 = vmatprep.subr.bf16.mxu0 0
  %99 = vmatpush1.bf16.msra.mxu0 0
  %100 = vmatprep.subr.bf16.mxu0 0
  %101 = vmatpush1.bf16.msra.mxu0 0
  %102 = vmatprep.subr.bf16.mxu0 0
  %103 = vmatpush1.bf16.msra.mxu0 0
  %104 = vmatprep.subr.bf16.mxu0 0
  %105 = vmatpush1.bf16.msra.mxu0 0
  %106 = vmatprep.subr.bf16.mxu0 0
  %107 = vmatpush1.bf16.msra.mxu0 0
  %108 = vmatprep.subr.bf16.mxu0 0
  %109 = vmatpush1.bf16.msra.mxu0 0
  %110 = vmatprep.subr.bf16.mxu0 0
  %111 = vmatpush1.bf16.msra.mxu0 0
  %112 = vmatprep.subr.bf16.mxu0 0
  %113 = vmatpush1.bf16.msra.mxu0 0
  %114 = vmatprep.subr.bf16.mxu0 0
  %115 = vmatpush1.bf16.msra.mxu0 0
  %116 = vmatprep.subr.bf16.mxu0 0
  %117 = vmatpush1.bf16.msra.mxu0 0
  %118 = vmatprep.subr.bf16.mxu0 0
  %119 = vmatpush1.bf16.msra.mxu0 0
  %120 = vmatprep.subr.bf16.mxu0 0
  %121 = vmatpush1.bf16.msra.mxu0 0
  %122 = vmatprep.mubr.bf16.mxu0 0
  %123 = vmatmul.mubr.bf16.gmra.mrb[0].mxu0 %v88
  %v124 = vpop.f32.mrb[0].mxu0
  %v125 = vadd.f32 %v72, %v124
  %v126 = vpop.f32.mrb[0].mxu0
  %v127 = vpop.f32.mrb[0].mxu0
  %v128 = vadd.f32 %v72, %v127
  %v129 = vpop.f32.mrb[0].mxu0
  %130 = vdwg.mxu0
  %s131 = sld [smem:[#allocation3]]
  %vm132 = vcmp.ge.f32.partialorder %v125, 0.0
  %vm133 = vcmp.ge.f32.partialorder %v128, 0.0
  %v134 = vstv %s131
  %v135 = vmul.f32 %v134, %v125
  %v136 = vmul.f32 %v134, %v128
  %v137 = vsel %vm132, %v125, %v135
  %v138 = vsel %vm133, %v128, %v136
  %v139 = vpack.c.bf16 %v138, %v137
  %v140 = vld [vmem:[%s6] sm:$0xf]
  %v141 = vld [vmem:[%s6 + $0x4] sm:$0xf]
  %v142 = vld [vmem:[%s6 + $0x8] sm:$0xf]
  %v143 = vld [vmem:[%s6 + $0xc] sm:$0xf]
  %v144 = vld [vmem:[%s6 + $0x10] sm:$0xf]
  %v145 = vld [vmem:[%s6 + $0x14] sm:$0xf]
  %v146 = vld [vmem:[%s6 + $0x18] sm:$0xf]
  %v147 = vld [vmem:[%s6 + $0x1c] sm:$0xf]
  %v148 = vld [vmem:[%s7] sm:$0x1]
  %v150 = vlaneseq
  %v151 = vshrl.u32 %v150, 7
  %v152 = vsub.s32 0, %v151
  %v153 = vrot.slane %v148, %v152
  %v163 = vunpack.c.l.b16 %v140
  %v164 = vunpack.c.l.b16 %v141
  %v165 = vunpack.c.l.b16 %v142
  %v166 = vunpack.c.l.b16 %v143
  %v167 = vunpack.c.l.b16 %v144
  %v168 = vunpack.c.l.b16 %v145
  %v169 = vunpack.c.l.b16 %v146
  %v170 = vunpack.c.l.b16 %v147
  %v171 = vpack.c.b16 %v164, %v163
  %v172 = vpack.c.b16 %v166, %v165
  %v173 = vpack.c.b16 %v168, %v167
  %v174 = vpack.c.b16 %v170, %v169
  %vm179 = vcmask 523264
  %v181 = vsel %vm179, %v139, 0
  %183 = vmatprep.subr.bf16.mxu0 0
  %184 = vmatpush1.bf16.msra.mxu0 %v171
  %185 = vmatprep.subr.bf16.mxu0 0
  %186 = vmatpush1.bf16.msra.mxu0 %v172
  %187 = vmatprep.subr.bf16.mxu0 0
  %188 = vmatpush1.bf16.msra.mxu0 %v173
  %189 = vmatprep.subr.bf16.mxu0 0
  %190 = vmatpush1.bf16.msra.mxu0 %v174
  %191 = vmatprep.subr.bf16.mxu0 0
  %192 = vmatpush1.bf16.msra.mxu0 0
  %193 = vmatprep.subr.bf16.mxu0 0
  %194 = vmatpush1.bf16.msra.mxu0 0
  %195 = vmatprep.subr.bf16.mxu0 0
  %196 = vmatpush1.bf16.msra.mxu0 0
  %197 = vmatprep.subr.bf16.mxu0 0
  %198 = vmatpush1.bf16.msra.mxu0 0
  %199 = vmatprep.subr.bf16.mxu0 0
  %200 = vmatpush1.bf16.msra.mxu0 0
  %201 = vmatprep.subr.bf16.mxu0 0
  %202 = vmatpush1.bf16.msra.mxu0 0
  %203 = vmatprep.subr.bf16.mxu0 0
  %204 = vmatpush1.bf16.msra.mxu0 0
  %205 = vmatprep.subr.bf16.mxu0 0
  %206 = vmatpush1.bf16.msra.mxu0 0
  %207 = vmatprep.subr.bf16.mxu0 0
  %208 = vmatpush1.bf16.msra.mxu0 0
  %209 = vmatprep.subr.bf16.mxu0 0
  %210 = vmatpush1.bf16.msra.mxu0 0
  %211 = vmatprep.subr.bf16.mxu0 0
  %212 = vmatpush1.bf16.msra.mxu0 0
  %213 = vmatprep.subr.bf16.mxu0 0
  %214 = vmatpush1.bf16.msra.mxu0 0
  %215 = vmatprep.mubr.bf16.mxu0 0
  %216 = vmatmul.mubr.bf16.gmra.mrb[0].mxu0 %v181
  %v217 = vpop.f32.mrb[0].mxu0
  %v218 = vadd.f32 %v153, %v217
  %v219 = vpop.f32.mrb[0].mxu0
  %v220 = vpop.f32.mrb[0].mxu0
  %v221 = vadd.f32 %v153, %v220
  %v222 = vpop.f32.mrb[0].mxu0
  %223 = vdwg.mxu0
  %s224 = sld [smem:[#allocation3 + $0x1]]
  %vm225 = vcmp.ge.f32.partialorder %v218, 0.0
  %vm226 = vcmp.ge.f32.partialorder %v221, 0.0
  %v227 = vstv %s224
  %v228 = vmul.f32 %v227, %v218
  %v229 = vmul.f32 %v227, %v221
  %v230 = vsel %vm225, %v218, %v228
  %v231 = vsel %vm226, %v221, %v229
  %v232 = vpack.c.bf16 %v231, %v230
  %v233 = vld [vmem:[%s8] sm:$0xf]
  %v234 = vld [vmem:[%s8 + $0x4] sm:$0xf]
  %v235 = vld [vmem:[%s8 + $0x8] sm:$0xf]
  %v236 = vld [vmem:[%s8 + $0xc] sm:$0xf]
  %v237 = vld [vmem:[%s9] sm:$0x1]
  %v239 = vlaneseq
  %v240 = vshrl.u32 %v239, 7
  %v241 = vsub.s32 0, %v240
  %v242 = vrot.slane %v237, %v241
  %v248 = vunpack.c.l.b16 %v233
  %v249 = vunpack.c.l.b16 %v234
  %v250 = vunpack.c.l.b16 %v235
  %v251 = vunpack.c.l.b16 %v236
  %v252 = vpack.c.b16 %v249, %v248
  %v253 = vpack.c.b16 %v251, %v250
  %v257 = vsel %vm86, %v232, 0
  %259 = vmatprep.subr.bf16.mxu0 0
  %260 = vmatpush1.bf16.msra.mxu0 %v252
  %261 = vmatprep.subr.bf16.mxu0 0
  %262 = vmatpush1.bf16.msra.mxu0 %v253
  %263 = vmatprep.subr.bf16.mxu0 0
  %264 = vmatpush1.bf16.msra.mxu0 0
  %265 = vmatprep.subr.bf16.mxu0 0
  %266 = vmatpush1.bf16.msra.mxu0 0
  %267 = vmatprep.subr.bf16.mxu0 0
  %268 = vmatpush1.bf16.msra.mxu0 0
  %269 = vmatprep.subr.bf16.mxu0 0
  %270 = vmatpush1.bf16.msra.mxu0 0
  %271 = vmatprep.subr.bf16.mxu0 0
  %272 = vmatpush1.bf16.msra.mxu0 0
  %273 = vmatprep.subr.bf16.mxu0 0
  %274 = vmatpush1.bf16.msra.mxu0 0
  %275 = vmatprep.subr.bf16.mxu0 0
  %276 = vmatpush1.bf16.msra.mxu0 0
  %277 = vmatprep.subr.bf16.mxu0 0
  %278 = vmatpush1.bf16.msra.mxu0 0
  %279 = vmatprep.subr.bf16.mxu0 0
  %280 = vmatpush1.bf16.msra.mxu0 0
  %281 = vmatprep.subr.bf16.mxu0 0
  %282 = vmatpush1.bf16.msra.mxu0 0
  %283 = vmatprep.subr.bf16.mxu0 0
  %284 = vmatpush1.bf16.msra.mxu0 0
  %285 = vmatprep.subr.bf16.mxu0 0
  %286 = vmatpush1.bf16.msra.mxu0 0
  %287 = vmatprep.subr.bf16.mxu0 0
  %288 = vmatpush1.bf16.msra.mxu0 0
  %289 = vmatprep.subr.bf16.mxu0 0
  %290 = vmatpush1.bf16.msra.mxu0 0
  %291 = vmatprep.mubr.bf16.mxu0 0
  %292 = vmatmul.mubr.bf16.gmra.mrb[0].mxu0 %v257
  %v293 = vpop.f32.mrb[0].mxu0
  %v294 = vadd.f32 %v242, %v293
  %v295 = vpop.f32.mrb[0].mxu0
  %v296 = vpop.f32.mrb[0].mxu0
  %v297 = vadd.f32 %v242, %v296
  %v298 = vpop.f32.mrb[0].mxu0
  %299 = vdwg.mxu0
  %vm300 = vcmask 64512
  %301 = vst.msk [vmem:[%s10] sm:$0xff] %vm300, %v294
  %302 = vst.msk [vmem:[%s10 + $0x8] sm:$0xff] %vm300, %v297
  // Predicated region
  $region38: #{nn2_forward.1} parent=0 // pred_check
    _
  $region39: #{nn2_forward.1} parent=0 // pred_check_branch
    %304 = sbr.rel (0) target = $region41
  $region40: #{nn2_forward.1} parent=0 // pred_region
    _
  $region41: #{nn2_forward.1} parent=0 // pred_fallthru
    _
  // Predicated region
  $region42: #{nn2_forward.1} parent=0 // pred_check
    _
  $region43: #{nn2_forward.1} parent=0 // pred_check_branch
    %306 = sbr.rel (0) target = $region45
  $region44: #{nn2_forward.1} parent=0 // pred_region
    _
  $region45: #{nn2_forward.1} parent=0 // pred_fallthru
    _

</llo_original>
